<compile_context>
chip_gen: v6e
topology: v6e:2x2x1
jax: 0.10.0
libtpu: 0.0.40
codegen_flags: <defaults>
</compile_context>

<pallas_src>
import functools

import jax
import jax.numpy as jnp
import numpy as np
from jax.experimental import pallas as pl
from jax.experimental.pallas import tpu as pltpu

EPS = 1e-5


# ---------------------------------------------------------------------------
# Pallas kernel: one grid step == NB batch elements, full (R = T*V, C) tile.
# ---------------------------------------------------------------------------
def tms_block_kernel(x_ref, res_ref, w1_ref, wbig_ref, misc_ref, out_ref, *, V):
    NB, R, C = x_ref.shape          # R = T * V
    bc = C // 4

    x = x_ref[...]                  # (NB, R, C) f32
    xf = x.reshape(NB * R, C)       # leading-dim reshape only

    b1 = misc_ref[0:1, :]           # packed small params, each (1, C)
    bbig = misc_ref[1:2, :]
    a2 = misc_ref[2:3, :]
    s2 = misc_ref[3:4, :]

    # --- fused 1x1 convs of all 4 branches (BN folded), bf16 on the MXU ----
    y = jnp.dot(xf.astype(jnp.bfloat16), w1_ref[...],
                preferred_element_type=jnp.float32) + b1        # (NB*R, C)

    # full-width masked ReLU: branches 0..2 are ReLU'd, branch 3 is not
    col = jax.lax.broadcasted_iota(jnp.int32, (NB * R, C), 1)
    y_act = jnp.where(col < 3 * bc, jnp.maximum(y, 0.0), y)

    # --- temporally shifted full-width copies (zero padded, per batch) -----
    ya = y_act.reshape(NB, R, C)
    zpad = jnp.zeros((NB, 2 * V, C), jnp.float32)
    yp = jnp.concatenate([zpad, ya, zpad], axis=1)              # (NB, R+4V, C)
    dn1 = yp[:, 1 * V:1 * V + R]    # y[t-1]
    up1 = yp[:, 3 * V:3 * V + R]    # y[t+1]
    dn2 = yp[:, 0 * V:0 * V + R]    # y[t-2]
    up2 = yp[:, 4 * V:4 * V + R]    # y[t+2]

    # --- both dilated temporal convs as ONE matmul (all taps fused on K) ---
    z = jnp.concatenate([ya, dn1, up1, dn2, up2], axis=2)       # (NB, R, 5C)
    zf = z.reshape(NB * R, 5 * C).astype(jnp.bfloat16)
    out_mm = jnp.dot(zf, wbig_ref[...],
                     preferred_element_type=jnp.float32) + bbig  # (NB*R, C)

    # --- branch 2: MaxPool2d((3,1), stride 1, pad (1,0)) then BN (affine) --
    #     ReLU output >= 0, so zero-padded shifted copies give the same max
    #     as -inf padding at the sequence boundaries.
    m = jnp.maximum(jnp.maximum(ya, dn1), up1).reshape(NB * R, C)
    out_pool = m * a2 + s2

    # --- per-branch column select + identity residual + res_module ---------
    out = jnp.where(col < 2 * bc, out_mm,
                    jnp.where(col < 3 * bc, out_pool, y_act))
    out = out + xf + res_ref[...].reshape(NB * R, C)
    out_ref[...] = out.reshape(NB, R, C)


# ---------------------------------------------------------------------------
# Wrapper: NCHW <-> (N, T*V, C) plumbing + pallas_call.
# ---------------------------------------------------------------------------
def temporal_multiscale_block(x_nchw, res_module_nchw, p):
    N, C, T, V = x_nchw.shape
    R = T * V
    x = jnp.transpose(x_nchw, (0, 2, 3, 1)).reshape(N, R, C)
    r = jnp.transpose(res_module_nchw, (0, 2, 3, 1)).reshape(N, R, C)

    # batch several samples per grid step so the matmul M dim is ~256-512
    NB = 1
    for cand in range(N, 0, -1):
        if N % cand == 0 and cand * R <= 512:
            NB = cand
            break
    # TODO(synk): at realistic TPGCN sizes (T~300, C=256) tile the T axis with
    # 2-row halos (and add a second "parallel" grid axis for v7x's 2 cores) so
    # double-buffered blocks fit 64 MiB VMEM; unnecessary at these shapes.

    out = pl.pallas_call(
        functools.partial(tms_block_kernel, V=V),
        out_shape=jax.ShapeDtypeStruct((N, R, C), jnp.float32),
        grid_spec=pltpu.PrefetchScalarGridSpec(
            num_scalar_prefetch=0,
            grid=(N // NB,),
            in_specs=[
                pl.BlockSpec((NB, R, C), lambda n: (n, 0, 0)),    # x
                pl.BlockSpec((NB, R, C), lambda n: (n, 0, 0)),    # res_module
                pl.BlockSpec((C, C), lambda n: (0, 0)),           # W1  (bf16)
                pl.BlockSpec((5 * C, C), lambda n: (0, 0)),       # Wbig (bf16)
                pl.BlockSpec((4, C), lambda n: (0, 0)),           # packed biases/scales
            ],
            out_specs=pl.BlockSpec((NB, R, C), lambda n: (n, 0, 0)),
        ),
        compiler_params=pltpu.CompilerParams(
            dimension_semantics=("parallel",),
            vmem_limit_bytes=48 * 1024 * 1024),
    )(x, r, p['W1'], p['Wbig'], p['misc'])

    return jnp.transpose(out.reshape(N, T, V, C), (0, 3, 1, 2))  # back to NCHW


# ---------------------------------------------------------------------------
# Deterministic parameter construction (mirrors the nn.Module __init__ shapes)
# and BN folding into the fused kernel weights.
# ---------------------------------------------------------------------------
def init_raw_params(key, C):
    bc = C // 4
    keys = iter(jax.random.split(key, 64))
    nrm = lambda k, s, sc=0.1: jax.random.normal(k, s, jnp.float32) * sc
    bn = lambda: dict(
        gamma=1.0 + nrm(next(keys), (bc,)),
        beta=nrm(next(keys), (bc,)),
        mean=nrm(next(keys), (bc,)),
        var=1.0 + 0.5 * jnp.abs(jax.random.normal(next(keys), (bc,), jnp.float32)),
    )
    raw = {}
    for i in range(4):                                  # 1x1 conv + BN per branch
        raw[f'w1_{i}'] = nrm(next(keys), (bc, C, 1, 1))
        raw[f'b1_{i}'] = nrm(next(keys), (bc,))
        raw[f'bn1_{i}'] = bn()
    for i in range(2):                                  # TemporalConv weights
        raw[f'wt_{i}'] = nrm(next(keys), (bc, bc, 3, 1))
        raw[f'bt_{i}'] = nrm(next(keys), (bc,))
    for i in range(3):                                  # second BN of branches 0,1,2
        raw[f'bn2_{i}'] = bn()
    return raw


def fold_params(raw, C):
    bc = C // 4

    # 1x1 convs of all 4 branches packed along output columns, BN1 folded.
    W1_cols, b1_cols = [], []
    for i in range(4):
        b = raw[f'bn1_{i}']
        s = b['gamma'] / jnp.sqrt(b['var'] + EPS)
        w = raw[f'w1_{i}'][:, :, 0, 0]                  # (bc, C) = (co, ci)
        W1_cols.append((w * s[:, None]).T)              # (C, bc)
        b1_cols.append((raw[f'b1_{i}'] - b['mean']) * s + b['beta'])
    W1 = jnp.concatenate(W1_cols, axis=1)               # (C, C)
    b1 = jnp.concatenate(b1_cols)                       # (C,)

    # Big block-structured temporal-conv weight over 5 shifted full-width
    # copies: contraction block order = [center, dn1, up1, dn2, up2].
    Wbig = jnp.zeros((5 * C, C), jnp.float32)
    bbig = jnp.zeros((C,), jnp.float32)
    # branch 0 (dil 1): taps -> (dn1, center, up1); branch 1 (dil 2): (dn2, center, up2)
    for i, blocks in enumerate(((1, 0, 2), (3, 0, 4))):
        b = raw[f'bn2_{i}']
        s = b['gamma'] / jnp.sqrt(b['var'] + EPS)
        wt = raw[f'wt_{i}'][:, :, :, 0]                 # (co, ci, k)
        wt = jnp.transpose(wt, (2, 1, 0)) * s[None, None, :]   # (k, ci, co), BN folded
        for tap, blk in enumerate(blocks):
            r0 = blk * C + i * bc
            Wbig = Wbig.at[r0:r0 + bc, i * bc:(i + 1) * bc].set(wt[tap])
        bbig = bbig.at[i * bc:(i + 1) * bc].set(
            (raw[f'bt_{i}'] - b['mean']) * s + b['beta'])

    # post-maxpool BN (branch 2) as full-width scale/shift (zeros elsewhere)
    b = raw['bn2_2']
    s = b['gamma'] / jnp.sqrt(b['var'] + EPS)
    a2 = jnp.zeros((C,), jnp.float32).at[2 * bc:3 * bc].set(s)
    s2 = jnp.zeros((C,), jnp.float32).at[2 * bc:3 * bc].set(b['beta'] - b['mean'] * s)

    misc = jnp.stack([b1, bbig, a2, s2], axis=0)        # (4, C) f32
    return dict(W1=W1.astype(jnp.bfloat16),
                Wbig=Wbig.astype(jnp.bfloat16),
                misc=misc)


# ---------------------------------------------------------------------------
# Pure-JAX reference (direct translation of the PyTorch forward, eval-mode BN)
# ---------------------------------------------------------------------------
def ref_forward(x, res_module, raw):
    N, C, T, V = x.shape
    bc = C // 4

    def bn(z, p):
        rs = lambda a: a[None, :, None, None]
        return (z - rs(p['mean'])) / jnp.sqrt(rs(p['var']) + EPS) * rs(p['gamma']) + rs(p['beta'])

    def conv1x1(z, w, b):
        return jnp.einsum('ncij,oc->noij', z, w[:, :, 0, 0]) + b[None, :, None, None]

    def tconv(z, w, b, dil, pad):
        zp = jnp.pad(z, ((0, 0), (0, 0), (pad, pad), (0, 0)))
        out = jnp.zeros((N, w.shape[0], T, V), jnp.float32)
        for tap in range(w.shape[2]):
            out = out + jnp.einsum('ncij,oc->noij',
                                   zp[:, :, tap * dil: tap * dil + T, :],
                                   w[:, :, tap, 0])
        return out + b[None, :, None, None]

    outs = []
    for i, dil in enumerate((1, 2)):
        pad = (3 + (3 - 1) * (dil - 1) - 1) // 2
        y = jax.nn.relu(bn(conv1x1(x, raw[f'w1_{i}'], raw[f'b1_{i}']), raw[f'bn1_{i}']))
        outs.append(bn(tconv(y, raw[f'wt_{i}'], raw[f'bt_{i}'], dil, pad), raw[f'bn2_{i}']))
    # maxpool branch
    y = jax.nn.relu(bn(conv1x1(x, raw['w1_2'], raw['b1_2']), raw['bn1_2']))
    yp = jnp.pad(y, ((0, 0), (0, 0), (1, 1), (0, 0)), constant_values=-jnp.inf)
    m = jnp.maximum(jnp.maximum(yp[:, :, 0:T], yp[:, :, 1:T + 1]), yp[:, :, 2:T + 2])
    outs.append(bn(m, raw['bn2_2']))
    # plain 1x1 branch
    outs.append(bn(conv1x1(x, raw['w1_3'], raw['b1_3']), raw['bn1_3']))

    out = jnp.concatenate(outs, axis=1)
    return out + x + res_module                     # residual = identity


# ---------------------------------------------------------------------------
if __name__ == "__main__":
    N, C, T, V = 2, 16, 16, 8                       # C multiple of 4 branches
    key = jax.random.PRNGKey(0)
    kx, kr, kp = jax.random.split(key, 3)
    x = jax.random.normal(kx, (N, C, T, V), jnp.float32)
    res_module = jax.random.normal(kr, (N, C, T, V), jnp.float32)

    raw = init_raw_params(kp, C)
    folded = fold_params(raw, C)

    out = temporal_multiscale_block(x, res_module, folded)
    out = jax.block_until_ready(out)

    ref = ref_forward(x, res_module, raw)
    assert out.shape == (N, C, T, V)
    # matmul operands are bf16 (f32 accumulation), so tolerance is loosened
    # slightly vs a pure-f32 reference.
    np.testing.assert_allclose(np.asarray(out), np.asarray(ref),
                               rtol=2e-2, atol=2e-2)
    print("KERNEL_OK")
</pallas_src>

<mosaic_0001>
module attributes {stable_mosaic.version = 11 : i64} {
  func.func @tms_block_kernel(%arg0: i32, %arg1: memref<2x128x16xf32, #tpu.memory_space<vmem>>, %arg2: memref<2x128x16xf32, #tpu.memory_space<vmem>>, %arg3: memref<16x16xbf16, #tpu.memory_space<vmem>>, %arg4: memref<80x16xbf16, #tpu.memory_space<vmem>>, %arg5: memref<4x16xf32, #tpu.memory_space<vmem>>, %arg6: memref<2x128x16xf32, #tpu.memory_space<vmem>>) attributes {dimension_semantics = [#tpu.dimension_semantics<parallel>], iteration_bounds = array<i64: 1>, scalar_prefetch = 0 : i64, scratch_operands = 0 : i64, tpu.core_type = #tpu.core_type<tc>, window_params = [{transform_indices = @transform_0, window_bounds = array<i64: 2, 128, 16>}, {transform_indices = @transform_1, window_bounds = array<i64: 2, 128, 16>}, {pipeline_mode = #tpu.pipeline_mode<synchronous>, transform_indices = @transform_2, window_bounds = array<i64: 16, 16>}, {pipeline_mode = #tpu.pipeline_mode<synchronous>, transform_indices = @transform_3, window_bounds = array<i64: 80, 16>}, {pipeline_mode = #tpu.pipeline_mode<synchronous>, transform_indices = @transform_4, window_bounds = array<i64: 4, 16>}, {transform_indices = @transform_5, window_bounds = array<i64: 2, 128, 16>}]} {
    %c0 = arith.constant 0 : index
    %c0_0 = arith.constant 0 : index
    %c0_1 = arith.constant 0 : index
    %0 = vector.load %arg1[%c0, %c0_0, %c0_1] : memref<2x128x16xf32, #tpu.memory_space<vmem>>, vector<2x128x16xf32>
    %1 = vector.shape_cast %0 : vector<2x128x16xf32> to vector<256x16xf32>
    %c0_2 = arith.constant 0 : index
    %c0_3 = arith.constant 0 : index
    %2 = vector.load %arg5[%c0_2, %c0_3] : memref<4x16xf32, #tpu.memory_space<vmem>>, vector<1x16xf32>
    %c1 = arith.constant 1 : index
    %c0_4 = arith.constant 0 : index
    %3 = vector.load %arg5[%c1, %c0_4] : memref<4x16xf32, #tpu.memory_space<vmem>>, vector<1x16xf32>
    %c2 = arith.constant 2 : index
    %c0_5 = arith.constant 0 : index
    %4 = vector.load %arg5[%c2, %c0_5] : memref<4x16xf32, #tpu.memory_space<vmem>>, vector<1x16xf32>
    %c3 = arith.constant 3 : index
    %c0_6 = arith.constant 0 : index
    %5 = vector.load %arg5[%c3, %c0_6] : memref<4x16xf32, #tpu.memory_space<vmem>>, vector<1x16xf32>
    %6 = arith.truncf %1 : vector<256x16xf32> to vector<256x16xbf16>
    %c0_7 = arith.constant 0 : index
    %c0_8 = arith.constant 0 : index
    %7 = vector.load %arg3[%c0_7, %c0_8] : memref<16x16xbf16, #tpu.memory_space<vmem>>, vector<16x16xbf16>
    %cst = arith.constant dense<0.000000e+00> : vector<256x16xf32>
    %8 = tpu.matmul %6, %7, %cst {dimension_numbers = #tpu.dot_dimension_numbers<[1], [0], [0], [1], [0, 0, 1, 1], [], []>} : vector<256x16xbf16>, vector<16x16xbf16>, vector<256x16xf32> -> vector<256x16xf32>
    %9 = vector.broadcast %2 : vector<1x16xf32> to vector<256x16xf32>
    %10 = arith.addf %8, %9 : vector<256x16xf32>
    %11 = tpu.iota {dimensions = array<i32: 1>} : vector<256x16xi32>
    %c12_i32 = arith.constant 12 : i32
    %12 = vector.broadcast %c12_i32 : i32 to vector<256x16xi32>
    %13 = arith.cmpi slt, %11, %12 : vector<256x16xi32>
    %cst_9 = arith.constant 0.000000e+00 : f32
    %14 = vector.broadcast %cst_9 : f32 to vector<256x16xf32>
    %15 = arith.maximumf %10, %14 : vector<256x16xf32>
    %16 = arith.select %13, %15, %10 : vector<256x16xi1>, vector<256x16xf32>
    %17 = vector.shape_cast %16 : vector<256x16xf32> to vector<2x128x16xf32>
    %cst_10 = arith.constant 0.000000e+00 : f32
    %18 = vector.broadcast %cst_10 : f32 to vector<2x16x16xf32>
    %19 = tpu.concatenate %18, %17, %18 in 1 : vector<2x16x16xf32>, vector<2x128x16xf32>, vector<2x16x16xf32> -> vector<2x160x16xf32>
    %20 = vector.extract_strided_slice %19 {offsets = [0, 8, 0], sizes = [2, 128, 16], strides = [1, 1, 1]} : vector<2x160x16xf32> to vector<2x128x16xf32>
    %21 = vector.extract_strided_slice %19 {offsets = [0, 24, 0], sizes = [2, 128, 16], strides = [1, 1, 1]} : vector<2x160x16xf32> to vector<2x128x16xf32>
    %22 = vector.extract_strided_slice %19 {offsets = [0, 0, 0], sizes = [2, 128, 16], strides = [1, 1, 1]} : vector<2x160x16xf32> to vector<2x128x16xf32>
    %23 = vector.extract_strided_slice %19 {offsets = [0, 32, 0], sizes = [2, 128, 16], strides = [1, 1, 1]} : vector<2x160x16xf32> to vector<2x128x16xf32>
    %24 = tpu.concatenate %17, %20, %21, %22, %23 in 2 : vector<2x128x16xf32>, vector<2x128x16xf32>, vector<2x128x16xf32>, vector<2x128x16xf32>, vector<2x128x16xf32> -> vector<2x128x80xf32>
    %25 = vector.shape_cast %24 : vector<2x128x80xf32> to vector<256x80xf32>
    %26 = arith.truncf %25 : vector<256x80xf32> to vector<256x80xbf16>
    %c0_11 = arith.constant 0 : index
    %c0_12 = arith.constant 0 : index
    %27 = vector.load %arg4[%c0_11, %c0_12] : memref<80x16xbf16, #tpu.memory_space<vmem>>, vector<80x16xbf16>
    %cst_13 = arith.constant dense<0.000000e+00> : vector<256x16xf32>
    %28 = tpu.matmul %26, %27, %cst_13 {dimension_numbers = #tpu.dot_dimension_numbers<[1], [0], [0], [1], [0, 0, 1, 1], [], []>} : vector<256x80xbf16>, vector<80x16xbf16>, vector<256x16xf32> -> vector<256x16xf32>
    %29 = vector.broadcast %3 : vector<1x16xf32> to vector<256x16xf32>
    %30 = arith.addf %28, %29 : vector<256x16xf32>
    %31 = arith.maximumf %17, %20 : vector<2x128x16xf32>
    %32 = arith.maximumf %31, %21 : vector<2x128x16xf32>
    %33 = vector.shape_cast %32 : vector<2x128x16xf32> to vector<256x16xf32>
    %34 = vector.broadcast %4 : vector<1x16xf32> to vector<256x16xf32>
    %35 = arith.mulf %33, %34 : vector<256x16xf32>
    %36 = vector.broadcast %5 : vector<1x16xf32> to vector<256x16xf32>
    %37 = arith.addf %35, %36 : vector<256x16xf32>
    %c8_i32 = arith.constant 8 : i32
    %38 = vector.broadcast %c8_i32 : i32 to vector<256x16xi32>
    %39 = arith.cmpi slt, %11, %38 : vector<256x16xi32>
    %c12_i32_14 = arith.constant 12 : i32
    %40 = vector.broadcast %c12_i32_14 : i32 to vector<256x16xi32>
    %41 = arith.cmpi slt, %11, %40 : vector<256x16xi32>
    %42 = arith.select %41, %37, %16 : vector<256x16xi1>, vector<256x16xf32>
    %43 = arith.select %39, %30, %42 : vector<256x16xi1>, vector<256x16xf32>
    %44 = arith.addf %43, %1 : vector<256x16xf32>
    %c0_15 = arith.constant 0 : index
    %c0_16 = arith.constant 0 : index
    %c0_17 = arith.constant 0 : index
    %45 = vector.load %arg2[%c0_15, %c0_16, %c0_17] : memref<2x128x16xf32, #tpu.memory_space<vmem>>, vector<2x128x16xf32>
    %46 = vector.shape_cast %45 : vector<2x128x16xf32> to vector<256x16xf32>
    %47 = arith.addf %44, %46 : vector<256x16xf32>
    %48 = vector.shape_cast %47 : vector<256x16xf32> to vector<2x128x16xf32>
    %c0_18 = arith.constant 0 : index
    %c0_19 = arith.constant 0 : index
    %c0_20 = arith.constant 0 : index
    %49 = vector.load %arg6[%c0_18, %c0_19, %c0_20] : memref<2x128x16xf32, #tpu.memory_space<vmem>>, vector<2x128x16xf32>
    tpu.vector_store %arg6[%c0_18, %c0_19, %c0_20], %48 {strides = array<i32>} : memref<2x128x16xf32, #tpu.memory_space<vmem>>, vector<2x128x16xf32>,
    return
  }
  func.func @transform_0(%arg0: i32) -> (i32, i32, i32) {
    %c0_i32 = arith.constant 0 : i32
    %c0_i32_0 = arith.constant 0 : i32
    %c0_i32_1 = arith.constant 0 : i32
    return %arg0, %c0_i32, %c0_i32_0 : i32, i32, i32
  }
  func.func @transform_1(%arg0: i32) -> (i32, i32, i32) {
    %c0_i32 = arith.constant 0 : i32
    %c0_i32_0 = arith.constant 0 : i32
    %c0_i32_1 = arith.constant 0 : i32
    return %arg0, %c0_i32, %c0_i32_0 : i32, i32, i32
  }
  func.func @transform_2(%arg0: i32) -> (i32, i32) {
    %c0_i32 = arith.constant 0 : i32
    %c0_i32_0 = arith.constant 0 : i32
    %c0_i32_1 = arith.constant 0 : i32
    return %c0_i32, %c0_i32_0 : i32, i32
  }
  func.func @transform_3(%arg0: i32) -> (i32, i32) {
    %c0_i32 = arith.constant 0 : i32
    %c0_i32_0 = arith.constant 0 : i32
    %c0_i32_1 = arith.constant 0 : i32
    return %c0_i32, %c0_i32_0 : i32, i32
  }
  func.func @transform_4(%arg0: i32) -> (i32, i32) {
    %c0_i32 = arith.constant 0 : i32
    %c0_i32_0 = arith.constant 0 : i32
    %c0_i32_1 = arith.constant 0 : i32
    return %c0_i32, %c0_i32_0 : i32, i32
  }
  func.func @transform_5(%arg0: i32) -> (i32, i32, i32) {
    %c0_i32 = arith.constant 0 : i32
    %c0_i32_0 = arith.constant 0 : i32
    %c0_i32_1 = arith.constant 0 : i32
    return %arg0, %c0_i32, %c0_i32_0 : i32, i32, i32
  }
}

</mosaic_0001>

<llo_original>
// kernel: tpu_custom_call.1
$region0: #{tpu_custom_call.1}
  #allocation0 [shape = 'u32[]', space=smem, size = 0x4, offset = 0x4, fixed_abs, tag = 'smem constant byte address 0x4 - core index']
  #allocation1 [shape = 'u32[144,128]{1,0:T(1,128)}', space=vmem, size = 0x12000, scoped, tag = 'internal scratch']
  %s0 = inlined_call_operand.vmem [shape: f32[2,128,16], index: 0, kind: input, shape index: {}]
  %s1 = inlined_call_operand.vmem [shape: f32[2,128,16], index: 1, kind: input, shape index: {}]
  %s2 = inlined_call_operand.vmem [shape: bf16[16,16], index: 2, kind: input, shape index: {}]
  %s3 = inlined_call_operand.vmem [shape: bf16[80,16], index: 3, kind: input, shape index: {}]
  %s4 = inlined_call_operand.vmem [shape: f32[4,16], index: 4, kind: input, shape index: {}]
  %s5 = inlined_call_operand.vmem [shape: f32[2,128,16], index: 5, kind: output, shape index: {}]
  %s6 = sld [smem:[#allocation0]]
  $region30: #{tpu_custom_call.1} parent=0
    _
  %s8 = ssub.s32 1, %s6
  %s9 = scalar_select 0, %s8, %s6
  // Predicated region
  $region2: #{tpu_custom_call.1} parent=0 // pred_check
    _
  $region3: #{tpu_custom_call.1} parent=0 // pred_check_branch
    %11 = sbr.rel (0) target = $region5
  $region4: #{tpu_custom_call.1} parent=0 // pred_region
    _
  $region5: #{tpu_custom_call.1} parent=0 // pred_fallthru
    _
  // Predicated region
  $region6: #{tpu_custom_call.1} parent=0 // pred_check
    _
  $region7: #{tpu_custom_call.1} parent=0 // pred_check_branch
    %13 = sbr.rel (0) target = $region9
  $region8: #{tpu_custom_call.1} parent=0 // pred_region
    _
  $region9: #{tpu_custom_call.1} parent=0 // pred_fallthru
    _
  // Predicated region
  $region10: #{tpu_custom_call.1} parent=0 // pred_check
    _
  $region11: #{tpu_custom_call.1} parent=0 // pred_check_branch
    %15 = sbr.rel (0) target = $region13
  $region12: #{tpu_custom_call.1} parent=0 // pred_region
    _
  $region13: #{tpu_custom_call.1} parent=0 // pred_fallthru
    _
  // Predicated region
  $region14: #{tpu_custom_call.1} parent=0 // pred_check
    _
  $region15: #{tpu_custom_call.1} parent=0 // pred_check_branch
    %17 = sbr.rel (0) target = $region17
  $region16: #{tpu_custom_call.1} parent=0 // pred_region
    _
  $region17: #{tpu_custom_call.1} parent=0 // pred_fallthru
    _
  // Predicated region
  $region18: #{tpu_custom_call.1} parent=0 // pred_check
    _
  $region19: #{tpu_custom_call.1} parent=0 // pred_check_branch
    %19 = sbr.rel (0) target = $region21
  $region20: #{tpu_custom_call.1} parent=0 // pred_region
    _
  $region21: #{tpu_custom_call.1} parent=0 // pred_fallthru
    _
  %v21 = vld [vmem:[%s0] sm:$0xff]
  %v22 = vld [vmem:[%s0 + $0x8] sm:$0xff]
  %v23 = vld [vmem:[%s0 + $0x10] sm:$0xff]
  %v24 = vld [vmem:[%s0 + $0x18] sm:$0xff]
  %v25 = vld [vmem:[%s0 + $0x20] sm:$0xff]
  %v26 = vld [vmem:[%s0 + $0x28] sm:$0xff]
  %v27 = vld [vmem:[%s0 + $0x30] sm:$0xff]
  %v28 = vld [vmem:[%s0 + $0x38] sm:$0xff]
  %v29 = vld [vmem:[%s0 + $0x40] sm:$0xff]
  %v30 = vld [vmem:[%s0 + $0x48] sm:$0xff]
  %v31 = vld [vmem:[%s0 + $0x50] sm:$0xff]
  %v32 = vld [vmem:[%s0 + $0x58] sm:$0xff]
  %v33 = vld [vmem:[%s0 + $0x60] sm:$0xff]
  %v34 = vld [vmem:[%s0 + $0x68] sm:$0xff]
  %v35 = vld [vmem:[%s0 + $0x70] sm:$0xff]
  %v36 = vld [vmem:[%s0 + $0x78] sm:$0xff]
  %v37 = vld [vmem:[%s0 + $0x80] sm:$0xff]
  %v38 = vld [vmem:[%s0 + $0x88] sm:$0xff]
  %v39 = vld [vmem:[%s0 + $0x90] sm:$0xff]
  %v40 = vld [vmem:[%s0 + $0x98] sm:$0xff]
  %v41 = vld [vmem:[%s0 + $0xa0] sm:$0xff]
  %v42 = vld [vmem:[%s0 + $0xa8] sm:$0xff]
  %v43 = vld [vmem:[%s0 + $0xb0] sm:$0xff]
  %v44 = vld [vmem:[%s0 + $0xb8] sm:$0xff]
  %v45 = vld [vmem:[%s0 + $0xc0] sm:$0xff]
  %v46 = vld [vmem:[%s0 + $0xc8] sm:$0xff]
  %v47 = vld [vmem:[%s0 + $0xd0] sm:$0xff]
  %v48 = vld [vmem:[%s0 + $0xd8] sm:$0xff]
  %v49 = vld [vmem:[%s0 + $0xe0] sm:$0xff]
  %v50 = vld [vmem:[%s0 + $0xe8] sm:$0xff]
  %v51 = vld [vmem:[%s0 + $0xf0] sm:$0xff]
  %v52 = vld [vmem:[%s0 + $0xf8] sm:$0xff]
  %v53 = vld [vmem:[%s4] sm:$0x1]
  %v54 = vld [vmem:[%s4 + $0x1] sm:$0x1]
  %v55 = vld [vmem:[%s4 + $0x2] sm:$0x1]
  %v56 = vld [vmem:[%s4 + $0x3] sm:$0x1]
  %v57 = vpack.c.bf16 %v22, %v21
  %v58 = vpack.c.bf16 %v24, %v23
  %v59 = vpack.c.bf16 %v26, %v25
  %v60 = vpack.c.bf16 %v28, %v27
  %v61 = vpack.c.bf16 %v30, %v29
  %v62 = vpack.c.bf16 %v32, %v31
  %v63 = vpack.c.bf16 %v34, %v33
  %v64 = vpack.c.bf16 %v36, %v35
  %v65 = vpack.c.bf16 %v38, %v37
  %v66 = vpack.c.bf16 %v40, %v39
  %v67 = vpack.c.bf16 %v42, %v41
  %v68 = vpack.c.bf16 %v44, %v43
  %v69 = vpack.c.bf16 %v46, %v45
  %v70 = vpack.c.bf16 %v48, %v47
  %v71 = vpack.c.bf16 %v50, %v49
  %v72 = vpack.c.bf16 %v52, %v51
  %v73 = vld [vmem:[%s2] sm:$0xf]
  %v74 = vld [vmem:[%s2 + $0x4] sm:$0xf]
  %v75 = vlaneseq
  %v76 = vshrl.u32 %v75, 7
  %v77 = vsub.s32 0, %v76
  %v78 = vrot.slane %v53, %v77
  %v81 = vunpack.c.l.b16 %v73
  %v82 = vunpack.c.l.b16 %v74
  %v83 = vpack.c.b16 %v82, %v81
  %vm85 = vcmask 130048
  %v87 = vsel %vm85, %v57, 0
  %v90 = vsel %vm85, %v58, 0
  %v93 = vsel %vm85, %v59, 0
  %v96 = vsel %vm85, %v60, 0
  %v99 = vsel %vm85, %v61, 0
  %v102 = vsel %vm85, %v62, 0
  %v105 = vsel %vm85, %v63, 0
  %v108 = vsel %vm85, %v64, 0
  %v111 = vsel %vm85, %v65, 0
  %v114 = vsel %vm85, %v66, 0
  %v117 = vsel %vm85, %v67, 0
  %v120 = vsel %vm85, %v68, 0
  %v123 = vsel %vm85, %v69, 0
  %v126 = vsel %vm85, %v70, 0
  %v129 = vsel %vm85, %v71, 0
  %v132 = vsel %vm85, %v72, 0
  %134 = vmatprep.subr.bf16.mxu0 0
  %135 = vmatpush1.bf16.msra.mxu0 0
  %136 = vmatprep.subr.bf16.mxu0 0
  %137 = vmatpush1.bf16.msra.mxu0 0
  %138 = vmatprep.subr.bf16.mxu0 0
  %139 = vmatpush1.bf16.msra.mxu0 0
  %140 = vmatprep.subr.bf16.mxu0 0
  %141 = vmatpush1.bf16.msra.mxu0 0
  %142 = vmatprep.subr.bf16.mxu0 0
  %143 = vmatpush1.bf16.msra.mxu0 0
  %144 = vmatprep.subr.bf16.mxu0 0
  %145 = vmatpush1.bf16.msra.mxu0 0
  %146 = vmatprep.subr.bf16.mxu0 0
  %147 = vmatpush1.bf16.msra.mxu0 0
  %148 = vmatprep.subr.bf16.mxu0 0
  %149 = vmatpush1.bf16.msra.mxu0 %v83
  %150 = vmatprep.subr.bf16.mxu0 0
  %151 = vmatpush2.bf16.msra.mxu0 0
  %152 = vmatprep.subr.bf16.mxu0 0
  %153 = vmatpush2.bf16.msra.mxu0 0
  %154 = vmatprep.subr.bf16.mxu0 0
  %155 = vmatpush2.bf16.msra.mxu0 0
  %156 = vmatprep.subr.bf16.mxu0 0
  %157 = vmatpush2.bf16.msra.mxu0 0
  %158 = vmatprep.subr.bf16.mxu0 0
  %159 = vmatpush2.bf16.msra.mxu0 0
  %160 = vmatprep.subr.bf16.mxu0 0
  %161 = vmatpush2.bf16.msra.mxu0 0
  %162 = vmatprep.subr.bf16.mxu0 0
  %163 = vmatpush2.bf16.msra.mxu0 0
  %164 = vmatprep.subr.bf16.mxu0 0
  %165 = vmatpush2.bf16.msra.mxu0 0
  %166 = vmatprep.mubr.bf16.mxu0 0
  %167 = vmatmul.mubr.bf16.gmra.mxu0 %v87
  %v168 = vpop.f32.mrf.mxu0
  %v169 = vadd.f32 %v78, %v168
  %v170 = vpop.f32.mrf.mxu0
  %v171 = vpop.f32.mrf.mxu0
  %v172 = vadd.f32 %v78, %v171
  %v173 = vpop.f32.mrf.mxu0
  %174 = vmatprep.mubr.bf16.mxu0 0
  %175 = vmatmul.mubr.bf16.gmra.mxu0 %v90
  %v176 = vpop.f32.mrf.mxu0
  %v177 = vadd.f32 %v78, %v176
  %v178 = vpop.f32.mrf.mxu0
  %v179 = vpop.f32.mrf.mxu0
  %v180 = vadd.f32 %v78, %v179
  %v181 = vpop.f32.mrf.mxu0
  %182 = vmatprep.mubr.bf16.mxu0 0
  %183 = vmatmul.mubr.bf16.gmra.mxu0 %v93
  %v184 = vpop.f32.mrf.mxu0
  %v185 = vadd.f32 %v78, %v184
  %v186 = vpop.f32.mrf.mxu0
  %v187 = vpop.f32.mrf.mxu0
  %v188 = vadd.f32 %v78, %v187
  %v189 = vpop.f32.mrf.mxu0
  %190 = vmatprep.mubr.bf16.mxu0 0
  %191 = vmatmul.mubr.bf16.gmra.mxu0 %v96
  %v192 = vpop.f32.mrf.mxu0
  %v193 = vadd.f32 %v78, %v192
  %v194 = vpop.f32.mrf.mxu0
  %v195 = vpop.f32.mrf.mxu0
  %v196 = vadd.f32 %v78, %v195
  %v197 = vpop.f32.mrf.mxu0
  %198 = vmatprep.mubr.bf16.mxu0 0
  %199 = vmatmul.mubr.bf16.gmra.mxu0 %v99
  %v200 = vpop.f32.mrf.mxu0
  %v201 = vadd.f32 %v78, %v200
  %v202 = vpop.f32.mrf.mxu0
  %v203 = vpop.f32.mrf.mxu0
  %v204 = vadd.f32 %v78, %v203
  %v205 = vpop.f32.mrf.mxu0
  %206 = vmatprep.mubr.bf16.mxu0 0
  %207 = vmatmul.mubr.bf16.gmra.mxu0 %v102
  %v208 = vpop.f32.mrf.mxu0
  %v209 = vadd.f32 %v78, %v208
  %v210 = vpop.f32.mrf.mxu0
  %v211 = vpop.f32.mrf.mxu0
  %v212 = vadd.f32 %v78, %v211
  %v213 = vpop.f32.mrf.mxu0
  %214 = vmatprep.mubr.bf16.mxu0 0
  %215 = vmatmul.mubr.bf16.gmra.mxu0 %v105
  %v216 = vpop.f32.mrf.mxu0
  %v217 = vadd.f32 %v78, %v216
  %v218 = vpop.f32.mrf.mxu0
  %v219 = vpop.f32.mrf.mxu0
  %v220 = vadd.f32 %v78, %v219
  %v221 = vpop.f32.mrf.mxu0
  %222 = vmatprep.mubr.bf16.mxu0 0
  %223 = vmatmul.mubr.bf16.gmra.mxu0 %v108
  %v224 = vpop.f32.mrf.mxu0
  %v225 = vadd.f32 %v78, %v224
  %v226 = vpop.f32.mrf.mxu0
  %v227 = vpop.f32.mrf.mxu0
  %v228 = vadd.f32 %v78, %v227
  %v229 = vpop.f32.mrf.mxu0
  %230 = vmatprep.mubr.bf16.mxu0 0
  %231 = vmatmul.mubr.bf16.gmra.mxu0 %v111
  %v232 = vpop.f32.mrf.mxu0
  %v233 = vadd.f32 %v78, %v232
  %v234 = vpop.f32.mrf.mxu0
  %v235 = vpop.f32.mrf.mxu0
  %v236 = vadd.f32 %v78, %v235
  %v237 = vpop.f32.mrf.mxu0
  %238 = vmatprep.mubr.bf16.mxu0 0
  %239 = vmatmul.mubr.bf16.gmra.mxu0 %v114
  %v240 = vpop.f32.mrf.mxu0
  %v241 = vadd.f32 %v78, %v240
  %v242 = vpop.f32.mrf.mxu0
  %v243 = vpop.f32.mrf.mxu0
  %v244 = vadd.f32 %v78, %v243
  %v245 = vpop.f32.mrf.mxu0
  %246 = vmatprep.mubr.bf16.mxu0 0
  %247 = vmatmul.mubr.bf16.gmra.mxu0 %v117
  %v248 = vpop.f32.mrf.mxu0
  %v249 = vadd.f32 %v78, %v248
  %v250 = vpop.f32.mrf.mxu0
  %v251 = vpop.f32.mrf.mxu0
  %v252 = vadd.f32 %v78, %v251
  %v253 = vpop.f32.mrf.mxu0
  %254 = vmatprep.mubr.bf16.mxu0 0
  %255 = vmatmul.mubr.bf16.gmra.mxu0 %v120
  %v256 = vpop.f32.mrf.mxu0
  %v257 = vadd.f32 %v78, %v256
  %v258 = vpop.f32.mrf.mxu0
  %v259 = vpop.f32.mrf.mxu0
  %v260 = vadd.f32 %v78, %v259
  %v261 = vpop.f32.mrf.mxu0
  %262 = vmatprep.mubr.bf16.mxu0 0
  %263 = vmatmul.mubr.bf16.gmra.mxu0 %v123
  %v264 = vpop.f32.mrf.mxu0
  %v265 = vadd.f32 %v78, %v264
  %v266 = vpop.f32.mrf.mxu0
  %v267 = vpop.f32.mrf.mxu0
  %v268 = vadd.f32 %v78, %v267
  %v269 = vpop.f32.mrf.mxu0
  %270 = vmatprep.mubr.bf16.mxu0 0
  %271 = vmatmul.mubr.bf16.gmra.mxu0 %v126
  %v272 = vpop.f32.mrf.mxu0
  %v273 = vadd.f32 %v78, %v272
  %v274 = vpop.f32.mrf.mxu0
  %v275 = vpop.f32.mrf.mxu0
  %v276 = vadd.f32 %v78, %v275
  %v277 = vpop.f32.mrf.mxu0
  %278 = vmatprep.mubr.bf16.mxu0 0
  %279 = vmatmul.mubr.bf16.gmra.mxu0 %v129
  %v280 = vpop.f32.mrf.mxu0
  %v281 = vadd.f32 %v78, %v280
  %v282 = vpop.f32.mrf.mxu0
  %v283 = vpop.f32.mrf.mxu0
  %v284 = vadd.f32 %v78, %v283
  %v285 = vpop.f32.mrf.mxu0
  %286 = vmatprep.mubr.bf16.mxu0 0
  %287 = vmatmul.mubr.bf16.gmra.mxu0 %v132
  %v288 = vpop.f32.mrf.mxu0
  %v289 = vadd.f32 %v78, %v288
  %v290 = vpop.f32.mrf.mxu0
  %v291 = vpop.f32.mrf.mxu0
  %v292 = vadd.f32 %v78, %v291
  %v293 = vpop.f32.mrf.mxu0
  %294 = vdwg.mxu0
  %v295 = vlaneseq
  %v296 = vand.u32 %v295, 127
  %vm297 = vcmp.lt.s32.totalorder %v296, 12
  %v298 = vmax.f32 %v169, 0.0
  %v299 = vmax.f32 %v172, 0.0
  %v300 = vmax.f32 %v177, 0.0
  %v301 = vmax.f32 %v180, 0.0
  %v302 = vmax.f32 %v185, 0.0
  %v303 = vmax.f32 %v188, 0.0
  %v304 = vmax.f32 %v193, 0.0
  %v305 = vmax.f32 %v196, 0.0
  %v306 = vmax.f32 %v201, 0.0
  %v307 = vmax.f32 %v204, 0.0
  %v308 = vmax.f32 %v209, 0.0
  %v309 = vmax.f32 %v212, 0.0
  %v310 = vmax.f32 %v217, 0.0
  %v311 = vmax.f32 %v220, 0.0
  %v312 = vmax.f32 %v225, 0.0
  %v313 = vmax.f32 %v228, 0.0
  %v314 = vmax.f32 %v233, 0.0
  %v315 = vmax.f32 %v236, 0.0
  %v316 = vmax.f32 %v241, 0.0
  %v317 = vmax.f32 %v244, 0.0
  %v318 = vmax.f32 %v249, 0.0
  %v319 = vmax.f32 %v252, 0.0
  %v320 = vmax.f32 %v257, 0.0
  %v321 = vmax.f32 %v260, 0.0
  %v322 = vmax.f32 %v265, 0.0
  %v323 = vmax.f32 %v268, 0.0
  %v324 = vmax.f32 %v273, 0.0
  %v325 = vmax.f32 %v276, 0.0
  %v326 = vmax.f32 %v281, 0.0
  %v327 = vmax.f32 %v284, 0.0
  %v328 = vmax.f32 %v289, 0.0
  %v329 = vmax.f32 %v292, 0.0
  %v330 = vsel %vm297, %v298, %v169
  %v331 = vsel %vm297, %v299, %v172
  %v332 = vsel %vm297, %v300, %v177
  %v333 = vsel %vm297, %v301, %v180
  %v334 = vsel %vm297, %v302, %v185
  %v335 = vsel %vm297, %v303, %v188
  %v336 = vsel %vm297, %v304, %v193
  %v337 = vsel %vm297, %v305, %v196
  %v338 = vsel %vm297, %v306, %v201
  %v339 = vsel %vm297, %v307, %v204
  %v340 = vsel %vm297, %v308, %v209
  %v341 = vsel %vm297, %v309, %v212
  %v342 = vsel %vm297, %v310, %v217
  %v343 = vsel %vm297, %v311, %v220
  %v344 = vsel %vm297, %v312, %v225
  %v345 = vsel %vm297, %v313, %v228
  %v346 = vsel %vm297, %v314, %v233
  %v347 = vsel %vm297, %v315, %v236
  %v348 = vsel %vm297, %v316, %v241
  %v349 = vsel %vm297, %v317, %v244
  %v350 = vsel %vm297, %v318, %v249
  %v351 = vsel %vm297, %v319, %v252
  %v352 = vsel %vm297, %v320, %v257
  %v353 = vsel %vm297, %v321, %v260
  %v354 = vsel %vm297, %v322, %v265
  %v355 = vsel %vm297, %v323, %v268
  %v356 = vsel %vm297, %v324, %v273
  %v357 = vsel %vm297, %v325, %v276
  %v358 = vsel %vm297, %v326, %v281
  %v359 = vsel %vm297, %v327, %v284
  %v360 = vsel %vm297, %v328, %v289
  %v361 = vsel %vm297, %v329, %v292
  %393 = vrot.lane.b32.xlu0 0.0, 16
  %v394 = vpop.permute.xlu0 %393
  %395 = vrot.lane.b32.xlu0 %v330, 16
  %v396 = vpop.permute.xlu0 %395
  %397 = vrot.lane.b32.xlu0 %v331, 16
  %v398 = vpop.permute.xlu0 %397
  %399 = vrot.lane.b32.xlu0 %v332, 16
  %v400 = vpop.permute.xlu0 %399
  %401 = vrot.lane.b32.xlu0 %v333, 16
  %v402 = vpop.permute.xlu0 %401
  %403 = vrot.lane.b32.xlu0 %v334, 16
  %v404 = vpop.permute.xlu0 %403
  %405 = vrot.lane.b32.xlu0 %v335, 16
  %v406 = vpop.permute.xlu0 %405
  %407 = vrot.lane.b32.xlu0 %v336, 16
  %v408 = vpop.permute.xlu0 %407
  %409 = vrot.lane.b32.xlu0 %v337, 16
  %v410 = vpop.permute.xlu0 %409
  %411 = vrot.lane.b32.xlu0 %v338, 16
  %v412 = vpop.permute.xlu0 %411
  %413 = vrot.lane.b32.xlu0 %v339, 16
  %v414 = vpop.permute.xlu0 %413
  %415 = vrot.lane.b32.xlu0 %v340, 16
  %v416 = vpop.permute.xlu0 %415
  %417 = vrot.lane.b32.xlu0 %v341, 16
  %v418 = vpop.permute.xlu0 %417
  %419 = vrot.lane.b32.xlu0 %v342, 16
  %v420 = vpop.permute.xlu0 %419
  %421 = vrot.lane.b32.xlu0 %v343, 16
  %v422 = vpop.permute.xlu0 %421
  %423 = vrot.lane.b32.xlu0 %v344, 16
  %v424 = vpop.permute.xlu0 %423
  %425 = vrot.lane.b32.xlu0 %v346, 16
  %v426 = vpop.permute.xlu0 %425
  %427 = vrot.lane.b32.xlu0 %v347, 16
  %v428 = vpop.permute.xlu0 %427
  %429 = vrot.lane.b32.xlu0 %v348, 16
  %v430 = vpop.permute.xlu0 %429
  %431 = vrot.lane.b32.xlu0 %v349, 16
  %v432 = vpop.permute.xlu0 %431
  %433 = vrot.lane.b32.xlu0 %v350, 16
  %v434 = vpop.permute.xlu0 %433
  %435 = vrot.lane.b32.xlu0 %v351, 16
  %v436 = vpop.permute.xlu0 %435
  %437 = vrot.lane.b32.xlu0 %v352, 16
  %v438 = vpop.permute.xlu0 %437
  %439 = vrot.lane.b32.xlu0 %v353, 16
  %v440 = vpop.permute.xlu0 %439
  %441 = vrot.lane.b32.xlu0 %v354, 16
  %v442 = vpop.permute.xlu0 %441
  %443 = vrot.lane.b32.xlu0 %v355, 16
  %v444 = vpop.permute.xlu0 %443
  %445 = vrot.lane.b32.xlu0 %v356, 16
  %v446 = vpop.permute.xlu0 %445
  %447 = vrot.lane.b32.xlu0 %v357, 16
  %v448 = vpop.permute.xlu0 %447
  %449 = vrot.lane.b32.xlu0 %v358, 16
  %v450 = vpop.permute.xlu0 %449
  %451 = vrot.lane.b32.xlu0 %v359, 16
  %v452 = vpop.permute.xlu0 %451
  %453 = vrot.lane.b32.xlu0 %v360, 16
  %v454 = vpop.permute.xlu0 %453
  %488 = vrot.lane.b32.xlu0 %v331, 32
  %v489 = vpop.permute.xlu0 %488
  %490 = vrot.lane.b32.xlu0 %v332, 32
  %v491 = vpop.permute.xlu0 %490
  %492 = vrot.lane.b32.xlu0 %v333, 32
  %v493 = vpop.permute.xlu0 %492
  %494 = vrot.lane.b32.xlu0 %v334, 32
  %v495 = vpop.permute.xlu0 %494
  %496 = vrot.lane.b32.xlu0 %v335, 32
  %v497 = vpop.permute.xlu0 %496
  %498 = vrot.lane.b32.xlu0 %v336, 32
  %v499 = vpop.permute.xlu0 %498
  %500 = vrot.lane.b32.xlu0 %v337, 32
  %v501 = vpop.permute.xlu0 %500
  %502 = vrot.lane.b32.xlu0 %v338, 32
  %v503 = vpop.permute.xlu0 %502
  %504 = vrot.lane.b32.xlu0 %v339, 32
  %v505 = vpop.permute.xlu0 %504
  %506 = vrot.lane.b32.xlu0 %v340, 32
  %v507 = vpop.permute.xlu0 %506
  %508 = vrot.lane.b32.xlu0 %v341, 32
  %v509 = vpop.permute.xlu0 %508
  %510 = vrot.lane.b32.xlu0 %v342, 32
  %v511 = vpop.permute.xlu0 %510
  %512 = vrot.lane.b32.xlu0 %v343, 32
  %v513 = vpop.permute.xlu0 %512
  %514 = vrot.lane.b32.xlu0 %v344, 32
  %v515 = vpop.permute.xlu0 %514
  %516 = vrot.lane.b32.xlu0 %v345, 32
  %v517 = vpop.permute.xlu0 %516
  %518 = vrot.lane.b32.xlu0 0.0, 32
  %v519 = vpop.permute.xlu0 %518
  %520 = vrot.lane.b32.xlu0 %v347, 32
  %v521 = vpop.permute.xlu0 %520
  %522 = vrot.lane.b32.xlu0 %v348, 32
  %v523 = vpop.permute.xlu0 %522
  %524 = vrot.lane.b32.xlu0 %v349, 32
  %v525 = vpop.permute.xlu0 %524
  %526 = vrot.lane.b32.xlu0 %v350, 32
  %v527 = vpop.permute.xlu0 %526
  %528 = vrot.lane.b32.xlu0 %v351, 32
  %v529 = vpop.permute.xlu0 %528
  %530 = vrot.lane.b32.xlu0 %v352, 32
  %v531 = vpop.permute.xlu0 %530
  %532 = vrot.lane.b32.xlu0 %v353, 32
  %v533 = vpop.permute.xlu0 %532
  %534 = vrot.lane.b32.xlu0 %v354, 32
  %v535 = vpop.permute.xlu0 %534
  %536 = vrot.lane.b32.xlu0 %v355, 32
  %v537 = vpop.permute.xlu0 %536
  %538 = vrot.lane.b32.xlu0 %v356, 32
  %v539 = vpop.permute.xlu0 %538
  %540 = vrot.lane.b32.xlu0 %v357, 32
  %v541 = vpop.permute.xlu0 %540
  %542 = vrot.lane.b32.xlu0 %v358, 32
  %v543 = vpop.permute.xlu0 %542
  %544 = vrot.lane.b32.xlu0 %v359, 32
  %v545 = vpop.permute.xlu0 %544
  %546 = vrot.lane.b32.xlu0 %v360, 32
  %v547 = vpop.permute.xlu0 %546
  %548 = vrot.lane.b32.xlu0 %v361, 32
  %v549 = vpop.permute.xlu0 %548
  %581 = vrot.lane.b32.xlu0 0.0, 48
  %v582 = vpop.permute.xlu0 %581
  %583 = vrot.lane.b32.xlu0 %v330, 48
  %v584 = vpop.permute.xlu0 %583
  %585 = vrot.lane.b32.xlu0 %v331, 48
  %v586 = vpop.permute.xlu0 %585
  %587 = vrot.lane.b32.xlu0 %v332, 48
  %v588 = vpop.permute.xlu0 %587
  %589 = vrot.lane.b32.xlu0 %v333, 48
  %v590 = vpop.permute.xlu0 %589
  %591 = vrot.lane.b32.xlu0 %v334, 48
  %v592 = vpop.permute.xlu0 %591
  %593 = vrot.lane.b32.xlu0 %v335, 48
  %v594 = vpop.permute.xlu0 %593
  %595 = vrot.lane.b32.xlu0 %v336, 48
  %v596 = vpop.permute.xlu0 %595
  %597 = vrot.lane.b32.xlu0 %v337, 48
  %v598 = vpop.permute.xlu0 %597
  %599 = vrot.lane.b32.xlu0 %v338, 48
  %v600 = vpop.permute.xlu0 %599
  %601 = vrot.lane.b32.xlu0 %v339, 48
  %v602 = vpop.permute.xlu0 %601
  %603 = vrot.lane.b32.xlu0 %v340, 48
  %v604 = vpop.permute.xlu0 %603
  %605 = vrot.lane.b32.xlu0 %v341, 48
  %v606 = vpop.permute.xlu0 %605
  %607 = vrot.lane.b32.xlu0 %v342, 48
  %v608 = vpop.permute.xlu0 %607
  %609 = vrot.lane.b32.xlu0 %v343, 48
  %v610 = vpop.permute.xlu0 %609
  %611 = vrot.lane.b32.xlu0 %v346, 48
  %v612 = vpop.permute.xlu0 %611
  %613 = vrot.lane.b32.xlu0 %v347, 48
  %v614 = vpop.permute.xlu0 %613
  %615 = vrot.lane.b32.xlu0 %v348, 48
  %v616 = vpop.permute.xlu0 %615
  %617 = vrot.lane.b32.xlu0 %v349, 48
  %v618 = vpop.permute.xlu0 %617
  %619 = vrot.lane.b32.xlu0 %v350, 48
  %v620 = vpop.permute.xlu0 %619
  %621 = vrot.lane.b32.xlu0 %v351, 48
  %v622 = vpop.permute.xlu0 %621
  %623 = vrot.lane.b32.xlu0 %v352, 48
  %v624 = vpop.permute.xlu0 %623
  %625 = vrot.lane.b32.xlu0 %v353, 48
  %v626 = vpop.permute.xlu0 %625
  %627 = vrot.lane.b32.xlu0 %v354, 48
  %v628 = vpop.permute.xlu0 %627
  %629 = vrot.lane.b32.xlu0 %v355, 48
  %v630 = vpop.permute.xlu0 %629
  %631 = vrot.lane.b32.xlu0 %v356, 48
  %v632 = vpop.permute.xlu0 %631
  %633 = vrot.lane.b32.xlu0 %v357, 48
  %v634 = vpop.permute.xlu0 %633
  %635 = vrot.lane.b32.xlu0 %v358, 48
  %v636 = vpop.permute.xlu0 %635
  %637 = vrot.lane.b32.xlu0 %v359, 48
  %v638 = vpop.permute.xlu0 %637
  %668 = vrot.lane.b32.xlu0 %v332, 64
  %v669 = vpop.permute.xlu0 %668
  %670 = vrot.lane.b32.xlu0 %v333, 64
  %v671 = vpop.permute.xlu0 %670
  %672 = vrot.lane.b32.xlu0 %v334, 64
  %v673 = vpop.permute.xlu0 %672
  %674 = vrot.lane.b32.xlu0 %v335, 64
  %v675 = vpop.permute.xlu0 %674
  %676 = vrot.lane.b32.xlu0 %v336, 64
  %v677 = vpop.permute.xlu0 %676
  %678 = vrot.lane.b32.xlu0 %v337, 64
  %v679 = vpop.permute.xlu0 %678
  %680 = vrot.lane.b32.xlu0 %v338, 64
  %v681 = vpop.permute.xlu0 %680
  %682 = vrot.lane.b32.xlu0 %v339, 64
  %v683 = vpop.permute.xlu0 %682
  %684 = vrot.lane.b32.xlu0 %v340, 64
  %v685 = vpop.permute.xlu0 %684
  %686 = vrot.lane.b32.xlu0 %v341, 64
  %v687 = vpop.permute.xlu0 %686
  %688 = vrot.lane.b32.xlu0 %v342, 64
  %v689 = vpop.permute.xlu0 %688
  %690 = vrot.lane.b32.xlu0 %v343, 64
  %v691 = vpop.permute.xlu0 %690
  %692 = vrot.lane.b32.xlu0 %v344, 64
  %v693 = vpop.permute.xlu0 %692
  %694 = vrot.lane.b32.xlu0 %v345, 64
  %v695 = vpop.permute.xlu0 %694
  %696 = vrot.lane.b32.xlu0 0.0, 64
  %v697 = vpop.permute.xlu0 %696
  %698 = vrot.lane.b32.xlu0 %v348, 64
  %v699 = vpop.permute.xlu0 %698
  %700 = vrot.lane.b32.xlu0 %v349, 64
  %v701 = vpop.permute.xlu0 %700
  %702 = vrot.lane.b32.xlu0 %v350, 64
  %v703 = vpop.permute.xlu0 %702
  %704 = vrot.lane.b32.xlu0 %v351, 64
  %v705 = vpop.permute.xlu0 %704
  %706 = vrot.lane.b32.xlu0 %v352, 64
  %v707 = vpop.permute.xlu0 %706
  %708 = vrot.lane.b32.xlu0 %v353, 64
  %v709 = vpop.permute.xlu0 %708
  %710 = vrot.lane.b32.xlu0 %v354, 64
  %v711 = vpop.permute.xlu0 %710
  %712 = vrot.lane.b32.xlu0 %v355, 64
  %v713 = vpop.permute.xlu0 %712
  %714 = vrot.lane.b32.xlu0 %v356, 64
  %v715 = vpop.permute.xlu0 %714
  %716 = vrot.lane.b32.xlu0 %v357, 64
  %v717 = vpop.permute.xlu0 %716
  %718 = vrot.lane.b32.xlu0 %v358, 64
  %v719 = vpop.permute.xlu0 %718
  %720 = vrot.lane.b32.xlu0 %v359, 64
  %v721 = vpop.permute.xlu0 %720
  %722 = vrot.lane.b32.xlu0 %v360, 64
  %v723 = vpop.permute.xlu0 %722
  %724 = vrot.lane.b32.xlu0 %v361, 64
  %v725 = vpop.permute.xlu0 %724
  %v755 = vsel %vm85, %v330, %v394
  %v756 = vsel %vm85, %v331, %v396
  %v757 = vsel %vm85, %v332, %v398
  %v758 = vsel %vm85, %v333, %v400
  %v759 = vsel %vm85, %v334, %v402
  %v760 = vsel %vm85, %v335, %v404
  %v761 = vsel %vm85, %v336, %v406
  %v762 = vsel %vm85, %v337, %v408
  %v763 = vsel %vm85, %v338, %v410
  %v764 = vsel %vm85, %v339, %v412
  %v765 = vsel %vm85, %v340, %v414
  %v766 = vsel %vm85, %v341, %v416
  %v767 = vsel %vm85, %v342, %v418
  %v768 = vsel %vm85, %v343, %v420
  %v769 = vsel %vm85, %v344, %v422
  %v770 = vsel %vm85, %v345, %v424
  %v771 = vsel %vm85, %v346, %v394
  %v772 = vsel %vm85, %v347, %v426
  %v773 = vsel %vm85, %v348, %v428
  %v774 = vsel %vm85, %v349, %v430
  %v775 = vsel %vm85, %v350, %v432
  %v776 = vsel %vm85, %v351, %v434
  %v777 = vsel %vm85, %v352, %v436
  %v778 = vsel %vm85, %v353, %v438
  %v779 = vsel %vm85, %v354, %v440
  %v780 = vsel %vm85, %v355, %v442
  %v781 = vsel %vm85, %v356, %v444
  %v782 = vsel %vm85, %v357, %v446
  %v783 = vsel %vm85, %v358, %v448
  %v784 = vsel %vm85, %v359, %v450
  %v785 = vsel %vm85, %v360, %v452
  %v786 = vsel %vm85, %v361, %v454
  %vm787 = vcmask 261120
  %v788 = vsel %vm787, %v755, %v489
  %v789 = vsel %vm787, %v756, %v491
  %v790 = vsel %vm787, %v757, %v493
  %v791 = vsel %vm787, %v758, %v495
  %v792 = vsel %vm787, %v759, %v497
  %v793 = vsel %vm787, %v760, %v499
  %v794 = vsel %vm787, %v761, %v501
  %v795 = vsel %vm787, %v762, %v503
  %v796 = vsel %vm787, %v763, %v505
  %v797 = vsel %vm787, %v764, %v507
  %v798 = vsel %vm787, %v765, %v509
  %v799 = vsel %vm787, %v766, %v511
  %v800 = vsel %vm787, %v767, %v513
  %v801 = vsel %vm787, %v768, %v515
  %v802 = vsel %vm787, %v769, %v517
  %v803 = vsel %vm787, %v770, %v519
  %v804 = vsel %vm787, %v771, %v521
  %v805 = vsel %vm787, %v772, %v523
  %v806 = vsel %vm787, %v773, %v525
  %v807 = vsel %vm787, %v774, %v527
  %v808 = vsel %vm787, %v775, %v529
  %v809 = vsel %vm787, %v776, %v531
  %v810 = vsel %vm787, %v777, %v533
  %v811 = vsel %vm787, %v778, %v535
  %v812 = vsel %vm787, %v779, %v537
  %v813 = vsel %vm787, %v780, %v539
  %v814 = vsel %vm787, %v781, %v541
  %v815 = vsel %vm787, %v782, %v543
  %v816 = vsel %vm787, %v783, %v545
  %v817 = vsel %vm787, %v784, %v547
  %v818 = vsel %vm787, %v785, %v549
  %v819 = vsel %vm787, %v786, %v519
  %vm820 = vcmask 392192
  %v821 = vsel %vm820, %v788, %v582
  %v822 = vsel %vm820, %v789, %v582
  %v823 = vsel %vm820, %v790, %v584
  %v824 = vsel %vm820, %v791, %v586
  %v825 = vsel %vm820, %v792, %v588
  %v826 = vsel %vm820, %v793, %v590
  %v827 = vsel %vm820, %v794, %v592
  %v828 = vsel %vm820, %v795, %v594
  %v829 = vsel %vm820, %v796, %v596
  %v830 = vsel %vm820, %v797, %v598
  %v831 = vsel %vm820, %v798, %v600
  %v832 = vsel %vm820, %v799, %v602
  %v833 = vsel %vm820, %v800, %v604
  %v834 = vsel %vm820, %v801, %v606
  %v835 = vsel %vm820, %v802, %v608
  %v836 = vsel %vm820, %v803, %v610
  %v837 = vsel %vm820, %v804, %v582
  %v838 = vsel %vm820, %v805, %v582
  %v839 = vsel %vm820, %v806, %v612
  %v840 = vsel %vm820, %v807, %v614
  %v841 = vsel %vm820, %v808, %v616
  %v842 = vsel %vm820, %v809, %v618
  %v843 = vsel %vm820, %v810, %v620
  %v844 = vsel %vm820, %v811, %v622
  %v845 = vsel %vm820, %v812, %v624
  %v846 = vsel %vm820, %v813, %v626
  %v847 = vsel %vm820, %v814, %v628
  %v848 = vsel %vm820, %v815, %v630
  %v849 = vsel %vm820, %v816, %v632
  %v850 = vsel %vm820, %v817, %v634
  %v851 = vsel %vm820, %v818, %v636
  %v852 = vsel %vm820, %v819, %v638
  %vm853 = vcmask 523264
  %v854 = vsel %vm853, %v821, %v669
  %v855 = vsel %vm853, %v822, %v671
  %v856 = vsel %vm853, %v823, %v673
  %v857 = vsel %vm853, %v824, %v675
  %v858 = vsel %vm853, %v825, %v677
  %v859 = vsel %vm853, %v826, %v679
  %v860 = vsel %vm853, %v827, %v681
  %v861 = vsel %vm853, %v828, %v683
  %v862 = vsel %vm853, %v829, %v685
  %v863 = vsel %vm853, %v830, %v687
  %v864 = vsel %vm853, %v831, %v689
  %v865 = vsel %vm853, %v832, %v691
  %v866 = vsel %vm853, %v833, %v693
  %v867 = vsel %vm853, %v834, %v695
  %v868 = vsel %vm853, %v835, %v697
  %v869 = vsel %vm853, %v836, %v697
  %v870 = vsel %vm853, %v837, %v699
  %v871 = vsel %vm853, %v838, %v701
  %v872 = vsel %vm853, %v839, %v703
  %v873 = vsel %vm853, %v840, %v705
  %v874 = vsel %vm853, %v841, %v707
  %v875 = vsel %vm853, %v842, %v709
  %v876 = vsel %vm853, %v843, %v711
  %v877 = vsel %vm853, %v844, %v713
  %v878 = vsel %vm853, %v845, %v715
  %v879 = vsel %vm853, %v846, %v717
  %v880 = vsel %vm853, %v847, %v719
  %v881 = vsel %vm853, %v848, %v721
  %v882 = vsel %vm853, %v849, %v723
  %v883 = vsel %vm853, %v850, %v725
  %v884 = vsel %vm853, %v851, %v697
  %v885 = vsel %vm853, %v852, %v697
  %v886 = vpack.c.bf16 %v855, %v854
  %v887 = vpack.c.bf16 %v857, %v856
  %v888 = vpack.c.bf16 %v859, %v858
  %v889 = vpack.c.bf16 %v861, %v860
  %v890 = vpack.c.bf16 %v863, %v862
  %v891 = vpack.c.bf16 %v865, %v864
  %v892 = vpack.c.bf16 %v867, %v866
  %v893 = vpack.c.bf16 %v869, %v868
  %v894 = vpack.c.bf16 %v871, %v870
  %v895 = vpack.c.bf16 %v873, %v872
  %v896 = vpack.c.bf16 %v875, %v874
  %v897 = vpack.c.bf16 %v877, %v876
  %v898 = vpack.c.bf16 %v879, %v878
  %v899 = vpack.c.bf16 %v881, %v880
  %v900 = vpack.c.bf16 %v883, %v882
  %v901 = vpack.c.bf16 %v885, %v884
  %v902 = vld [vmem:[%s3] sm:$0xf]
  %v903 = vld [vmem:[%s3 + $0x4] sm:$0xf]
  %v904 = vld [vmem:[%s3 + $0x8] sm:$0xf]
  %v905 = vld [vmem:[%s3 + $0xc] sm:$0xf]
  %v906 = vld [vmem:[%s3 + $0x10] sm:$0xf]
  %v907 = vld [vmem:[%s3 + $0x14] sm:$0xf]
  %v908 = vld [vmem:[%s3 + $0x18] sm:$0xf]
  %v909 = vld [vmem:[%s3 + $0x1c] sm:$0xf]
  %v910 = vld [vmem:[%s3 + $0x20] sm:$0xf]
  %v911 = vld [vmem:[%s3 + $0x24] sm:$0xf]
  %v912 = vlaneseq
  %v913 = vshrl.u32 %v912, 7
  %v914 = vsub.s32 0, %v913
  %v915 = vrot.slane %v54, %v914
  %v926 = vunpack.c.l.b16 %v902
  %v927 = vunpack.c.l.b16 %v903
  %v928 = vunpack.c.l.b16 %v904
  %v929 = vunpack.c.l.b16 %v905
  %v930 = vunpack.c.l.b16 %v906
  %v931 = vunpack.c.l.b16 %v907
  %v932 = vunpack.c.l.b16 %v908
  %v933 = vunpack.c.l.b16 %v909
  %v934 = vunpack.c.l.b16 %v910
  %v935 = vunpack.c.l.b16 %v911
  %v936 = vpack.c.b16 %v927, %v926
  %v937 = vpack.c.b16 %v929, %v928
  %v938 = vpack.c.b16 %v931, %v930
  %v939 = vpack.c.b16 %v933, %v932
  %v940 = vpack.c.b16 %v935, %v934
  %vm946 = vcmask 654336
  %v948 = vsel %vm946, %v886, 0
  %v951 = vsel %vm946, %v887, 0
  %v954 = vsel %vm946, %v888, 0
  %v957 = vsel %vm946, %v889, 0
  %v960 = vsel %vm946, %v890, 0
  %v963 = vsel %vm946, %v891, 0
  %v966 = vsel %vm946, %v892, 0
  %v969 = vsel %vm946, %v893, 0
  %v972 = vsel %vm946, %v894, 0
  %v975 = vsel %vm946, %v895, 0
  %v978 = vsel %vm946, %v896, 0
  %v981 = vsel %vm946, %v897, 0
  %v984 = vsel %vm946, %v898, 0
  %v987 = vsel %vm946, %v899, 0
  %v990 = vsel %vm946, %v900, 0
  %v993 = vsel %vm946, %v901, 0
  %995 = vmatprep.subr.bf16.mxu0 0
  %996 = vmatpush1.bf16.msra.mxu0 0
  %997 = vmatprep.subr.bf16.mxu0 0
  %998 = vmatpush1.bf16.msra.mxu0 0
  %999 = vmatprep.subr.bf16.mxu0 0
  %1000 = vmatpush1.bf16.msra.mxu0 0
  %1001 = vmatprep.subr.bf16.mxu0 0
  %1002 = vmatpush1.bf16.msra.mxu0 %v940
  %1003 = vmatprep.subr.bf16.mxu0 0
  %1004 = vmatpush1.bf16.msra.mxu0 %v939
  %1005 = vmatprep.subr.bf16.mxu0 0
  %1006 = vmatpush1.bf16.msra.mxu0 %v938
  %1007 = vmatprep.subr.bf16.mxu0 0
  %1008 = vmatpush1.bf16.msra.mxu0 %v937
  %1009 = vmatprep.subr.bf16.mxu0 0
  %1010 = vmatpush1.bf16.msra.mxu0 %v936
  %1011 = vmatprep.subr.bf16.mxu0 0
  %1012 = vmatpush2.bf16.msra.mxu0 0
  %1013 = vmatprep.subr.bf16.mxu0 0
  %1014 = vmatpush2.bf16.msra.mxu0 0
  %1015 = vmatprep.subr.bf16.mxu0 0
  %1016 = vmatpush2.bf16.msra.mxu0 0
  %1017 = vmatprep.subr.bf16.mxu0 0
  %1018 = vmatpush2.bf16.msra.mxu0 0
  %1019 = vmatprep.subr.bf16.mxu0 0
  %1020 = vmatpush2.bf16.msra.mxu0 0
  %1021 = vmatprep.subr.bf16.mxu0 0
  %1022 = vmatpush2.bf16.msra.mxu0 0
  %1023 = vmatprep.subr.bf16.mxu0 0
  %1024 = vmatpush2.bf16.msra.mxu0 0
  %1025 = vmatprep.subr.bf16.mxu0 0
  %1026 = vmatpush2.bf16.msra.mxu0 0
  %1027 = vmatprep.mubr.bf16.mxu0 0
  %1028 = vmatmul.mubr.bf16.gmra.mxu0 %v948
  %v1029 = vpop.f32.mrf.mxu0
  %v1030 = vadd.f32 %v915, %v1029
  %v1031 = vpop.f32.mrf.mxu0
  %v1032 = vpop.f32.mrf.mxu0
  %v1033 = vadd.f32 %v915, %v1032
  %v1034 = vpop.f32.mrf.mxu0
  %1035 = vmatprep.mubr.bf16.mxu0 0
  %1036 = vmatmul.mubr.bf16.gmra.mxu0 %v951
  %v1037 = vpop.f32.mrf.mxu0
  %v1038 = vadd.f32 %v915, %v1037
  %v1039 = vpop.f32.mrf.mxu0
  %v1040 = vpop.f32.mrf.mxu0
  %v1041 = vadd.f32 %v915, %v1040
  %v1042 = vpop.f32.mrf.mxu0
  %1043 = vmatprep.mubr.bf16.mxu0 0
  %1044 = vmatmul.mubr.bf16.gmra.mxu0 %v954
  %v1045 = vpop.f32.mrf.mxu0
  %v1046 = vadd.f32 %v915, %v1045
  %v1047 = vpop.f32.mrf.mxu0
  %v1048 = vpop.f32.mrf.mxu0
  %v1049 = vadd.f32 %v915, %v1048
  %v1050 = vpop.f32.mrf.mxu0
  %1051 = vmatprep.mubr.bf16.mxu0 0
  %1052 = vmatmul.mubr.bf16.gmra.mxu0 %v957
  %v1053 = vpop.f32.mrf.mxu0
  %v1054 = vadd.f32 %v915, %v1053
  %v1055 = vpop.f32.mrf.mxu0
  %v1056 = vpop.f32.mrf.mxu0
  %v1057 = vadd.f32 %v915, %v1056
  %v1058 = vpop.f32.mrf.mxu0
  %1059 = vmatprep.mubr.bf16.mxu0 0
  %1060 = vmatmul.mubr.bf16.gmra.mxu0 %v960
  %v1061 = vpop.f32.mrf.mxu0
  %v1062 = vadd.f32 %v915, %v1061
  %v1063 = vpop.f32.mrf.mxu0
  %v1064 = vpop.f32.mrf.mxu0
  %v1065 = vadd.f32 %v915, %v1064
  %v1066 = vpop.f32.mrf.mxu0
  %1067 = vmatprep.mubr.bf16.mxu0 0
  %1068 = vmatmul.mubr.bf16.gmra.mxu0 %v963
  %v1069 = vpop.f32.mrf.mxu0
  %v1070 = vadd.f32 %v915, %v1069
  %v1071 = vpop.f32.mrf.mxu0
  %v1072 = vpop.f32.mrf.mxu0
  %v1073 = vadd.f32 %v915, %v1072
  %v1074 = vpop.f32.mrf.mxu0
  %1075 = vmatprep.mubr.bf16.mxu0 0
  %1076 = vmatmul.mubr.bf16.gmra.mxu0 %v966
  %v1077 = vpop.f32.mrf.mxu0
  %v1078 = vadd.f32 %v915, %v1077
  %v1079 = vpop.f32.mrf.mxu0
  %v1080 = vpop.f32.mrf.mxu0
  %v1081 = vadd.f32 %v915, %v1080
  %v1082 = vpop.f32.mrf.mxu0
  %1083 = vmatprep.mubr.bf16.mxu0 0
  %1084 = vmatmul.mubr.bf16.gmra.mxu0 %v969
  %v1085 = vpop.f32.mrf.mxu0
  %v1086 = vadd.f32 %v915, %v1085
  %v1087 = vpop.f32.mrf.mxu0
  %v1088 = vpop.f32.mrf.mxu0
  %v1089 = vadd.f32 %v915, %v1088
  %v1090 = vpop.f32.mrf.mxu0
  %1091 = vmatprep.mubr.bf16.mxu0 0
  %1092 = vmatmul.mubr.bf16.gmra.mxu0 %v972
  %v1093 = vpop.f32.mrf.mxu0
  %v1094 = vadd.f32 %v915, %v1093
  %v1095 = vpop.f32.mrf.mxu0
  %v1096 = vpop.f32.mrf.mxu0
  %v1097 = vadd.f32 %v915, %v1096
  %v1098 = vpop.f32.mrf.mxu0
  %1099 = vmatprep.mubr.bf16.mxu0 0
  %1100 = vmatmul.mubr.bf16.gmra.mxu0 %v975
  %v1101 = vpop.f32.mrf.mxu0
  %v1102 = vadd.f32 %v915, %v1101
  %v1103 = vpop.f32.mrf.mxu0
  %v1104 = vpop.f32.mrf.mxu0
  %v1105 = vadd.f32 %v915, %v1104
  %v1106 = vpop.f32.mrf.mxu0
  %1107 = vmatprep.mubr.bf16.mxu0 0
  %1108 = vmatmul.mubr.bf16.gmra.mxu0 %v978
  %v1109 = vpop.f32.mrf.mxu0
  %v1110 = vadd.f32 %v915, %v1109
  %v1111 = vpop.f32.mrf.mxu0
  %v1112 = vpop.f32.mrf.mxu0
  %v1113 = vadd.f32 %v915, %v1112
  %v1114 = vpop.f32.mrf.mxu0
  %1115 = vmatprep.mubr.bf16.mxu0 0
  %1116 = vmatmul.mubr.bf16.gmra.mxu0 %v981
  %v1117 = vpop.f32.mrf.mxu0
  %v1118 = vadd.f32 %v915, %v1117
  %v1119 = vpop.f32.mrf.mxu0
  %v1120 = vpop.f32.mrf.mxu0
  %v1121 = vadd.f32 %v915, %v1120
  %v1122 = vpop.f32.mrf.mxu0
  %1123 = vmatprep.mubr.bf16.mxu0 0
  %1124 = vmatmul.mubr.bf16.gmra.mxu0 %v984
  %v1125 = vpop.f32.mrf.mxu0
  %v1126 = vadd.f32 %v915, %v1125
  %v1127 = vpop.f32.mrf.mxu0
  %v1128 = vpop.f32.mrf.mxu0
  %v1129 = vadd.f32 %v915, %v1128
  %v1130 = vpop.f32.mrf.mxu0
  %1131 = vmatprep.mubr.bf16.mxu0 0
  %1132 = vmatmul.mubr.bf16.gmra.mxu0 %v987
  %v1133 = vpop.f32.mrf.mxu0
  %v1134 = vadd.f32 %v915, %v1133
  %v1135 = vpop.f32.mrf.mxu0
  %v1136 = vpop.f32.mrf.mxu0
  %v1137 = vadd.f32 %v915, %v1136
  %v1138 = vpop.f32.mrf.mxu0
  %1139 = vmatprep.mubr.bf16.mxu0 0
  %1140 = vmatmul.mubr.bf16.gmra.mxu0 %v990
  %v1141 = vpop.f32.mrf.mxu0
  %v1142 = vadd.f32 %v915, %v1141
  %v1143 = vpop.f32.mrf.mxu0
  %v1144 = vpop.f32.mrf.mxu0
  %v1145 = vadd.f32 %v915, %v1144
  %v1146 = vpop.f32.mrf.mxu0
  %1147 = vmatprep.mubr.bf16.mxu0 0
  %1148 = vmatmul.mubr.bf16.gmra.mxu0 %v993
  %v1149 = vpop.f32.mrf.mxu0
  %v1150 = vadd.f32 %v915, %v1149
  %v1151 = vpop.f32.mrf.mxu0
  %v1152 = vpop.f32.mrf.mxu0
  %v1153 = vadd.f32 %v915, %v1152
  %v1154 = vpop.f32.mrf.mxu0
  %1155 = vdwg.mxu0
  %v1156 = vmax.f32 %v330, 0.0
  %v1157 = vmax.f32 %v331, %v330
  %v1158 = vmax.f32 %v332, %v331
  %v1159 = vmax.f32 %v333, %v332
  %v1160 = vmax.f32 %v334, %v333
  %v1161 = vmax.f32 %v335, %v334
  %v1162 = vmax.f32 %v336, %v335
  %v1163 = vmax.f32 %v337, %v336
  %v1164 = vmax.f32 %v338, %v337
  %v1165 = vmax.f32 %v339, %v338
  %v1166 = vmax.f32 %v340, %v339
  %v1167 = vmax.f32 %v341, %v340
  %v1168 = vmax.f32 %v342, %v341
  %v1169 = vmax.f32 %v343, %v342
  %v1170 = vmax.f32 %v344, %v343
  %v1171 = vmax.f32 %v345, %v344
  %v1172 = vmax.f32 %v346, 0.0
  %v1173 = vmax.f32 %v347, %v346
  %v1174 = vmax.f32 %v348, %v347
  %v1175 = vmax.f32 %v349, %v348
  %v1176 = vmax.f32 %v350, %v349
  %v1177 = vmax.f32 %v351, %v350
  %v1178 = vmax.f32 %v352, %v351
  %v1179 = vmax.f32 %v353, %v352
  %v1180 = vmax.f32 %v354, %v353
  %v1181 = vmax.f32 %v355, %v354
  %v1182 = vmax.f32 %v356, %v355
  %v1183 = vmax.f32 %v357, %v356
  %v1184 = vmax.f32 %v358, %v357
  %v1185 = vmax.f32 %v359, %v358
  %v1186 = vmax.f32 %v360, %v359
  %v1187 = vmax.f32 %v361, %v360
  %v1188 = vmax.f32 %v1156, %v331
  %v1189 = vmax.f32 %v1157, %v332
  %v1190 = vmax.f32 %v1158, %v333
  %v1191 = vmax.f32 %v1159, %v334
  %v1192 = vmax.f32 %v1160, %v335
  %v1193 = vmax.f32 %v1161, %v336
  %v1194 = vmax.f32 %v1162, %v337
  %v1195 = vmax.f32 %v1163, %v338
  %v1196 = vmax.f32 %v1164, %v339
  %v1197 = vmax.f32 %v1165, %v340
  %v1198 = vmax.f32 %v1166, %v341
  %v1199 = vmax.f32 %v1167, %v342
  %v1200 = vmax.f32 %v1168, %v343
  %v1201 = vmax.f32 %v1169, %v344
  %v1202 = vmax.f32 %v1170, %v345
  %v1203 = vmax.f32 %v1171, 0.0
  %v1204 = vmax.f32 %v1172, %v347
  %v1205 = vmax.f32 %v1173, %v348
  %v1206 = vmax.f32 %v1174, %v349
  %v1207 = vmax.f32 %v1175, %v350
  %v1208 = vmax.f32 %v1176, %v351
  %v1209 = vmax.f32 %v1177, %v352
  %v1210 = vmax.f32 %v1178, %v353
  %v1211 = vmax.f32 %v1179, %v354
  %v1212 = vmax.f32 %v1180, %v355
  %v1213 = vmax.f32 %v1181, %v356
  %v1214 = vmax.f32 %v1182, %v357
  %v1215 = vmax.f32 %v1183, %v358
  %v1216 = vmax.f32 %v1184, %v359
  %v1217 = vmax.f32 %v1185, %v360
  %v1218 = vmax.f32 %v1186, %v361
  %v1219 = vmax.f32 %v1187, 0.0
  %v1220 = vlaneseq
  %v1221 = vshrl.u32 %v1220, 7
  %v1222 = vsub.s32 0, %v1221
  %v1223 = vrot.slane %v55, %v1222
  %v1224 = vmul.f32 %v1188, %v1223
  %v1225 = vmul.f32 %v1189, %v1223
  %v1226 = vmul.f32 %v1190, %v1223
  %v1227 = vmul.f32 %v1191, %v1223
  %v1228 = vmul.f32 %v1192, %v1223
  %v1229 = vmul.f32 %v1193, %v1223
  %v1230 = vmul.f32 %v1194, %v1223
  %v1231 = vmul.f32 %v1195, %v1223
  %v1232 = vmul.f32 %v1196, %v1223
  %v1233 = vmul.f32 %v1197, %v1223
  %v1234 = vmul.f32 %v1198, %v1223
  %v1235 = vmul.f32 %v1199, %v1223
  %v1236 = vmul.f32 %v1200, %v1223
  %v1237 = vmul.f32 %v1201, %v1223
  %v1238 = vmul.f32 %v1202, %v1223
  %v1239 = vmul.f32 %v1203, %v1223
  %v1240 = vmul.f32 %v1204, %v1223
  %v1241 = vmul.f32 %v1205, %v1223
  %v1242 = vmul.f32 %v1206, %v1223
  %v1243 = vmul.f32 %v1207, %v1223
  %v1244 = vmul.f32 %v1208, %v1223
  %v1245 = vmul.f32 %v1209, %v1223
  %v1246 = vmul.f32 %v1210, %v1223
  %v1247 = vmul.f32 %v1211, %v1223
  %v1248 = vmul.f32 %v1212, %v1223
  %v1249 = vmul.f32 %v1213, %v1223
  %v1250 = vmul.f32 %v1214, %v1223
  %v1251 = vmul.f32 %v1215, %v1223
  %v1252 = vmul.f32 %v1216, %v1223
  %v1253 = vmul.f32 %v1217, %v1223
  %v1254 = vmul.f32 %v1218, %v1223
  %v1255 = vmul.f32 %v1219, %v1223
  %v1256 = vlaneseq
  %v1257 = vshrl.u32 %v1256, 7
  %v1258 = vsub.s32 0, %v1257
  %v1259 = vrot.slane %v56, %v1258
  %v1260 = vadd.f32 %v1224, %v1259
  %v1261 = vadd.f32 %v1225, %v1259
  %v1262 = vadd.f32 %v1226, %v1259
  %v1263 = vadd.f32 %v1227, %v1259
  %v1264 = vadd.f32 %v1228, %v1259
  %v1265 = vadd.f32 %v1229, %v1259
  %v1266 = vadd.f32 %v1230, %v1259
  %v1267 = vadd.f32 %v1231, %v1259
  %v1268 = vadd.f32 %v1232, %v1259
  %v1269 = vadd.f32 %v1233, %v1259
  %v1270 = vadd.f32 %v1234, %v1259
  %v1271 = vadd.f32 %v1235, %v1259
  %v1272 = vadd.f32 %v1236, %v1259
  %v1273 = vadd.f32 %v1237, %v1259
  %v1274 = vadd.f32 %v1238, %v1259
  %v1275 = vadd.f32 %v1239, %v1259
  %v1276 = vadd.f32 %v1240, %v1259
  %v1277 = vadd.f32 %v1241, %v1259
  %v1278 = vadd.f32 %v1242, %v1259
  %v1279 = vadd.f32 %v1243, %v1259
  %v1280 = vadd.f32 %v1244, %v1259
  %v1281 = vadd.f32 %v1245, %v1259
  %v1282 = vadd.f32 %v1246, %v1259
  %v1283 = vadd.f32 %v1247, %v1259
  %v1284 = vadd.f32 %v1248, %v1259
  %v1285 = vadd.f32 %v1249, %v1259
  %v1286 = vadd.f32 %v1250, %v1259
  %v1287 = vadd.f32 %v1251, %v1259
  %v1288 = vadd.f32 %v1252, %v1259
  %v1289 = vadd.f32 %v1253, %v1259
  %v1290 = vadd.f32 %v1254, %v1259
  %v1291 = vadd.f32 %v1255, %v1259
  %vm1292 = vcmp.lt.s32.totalorder %v296, 8
  %v1293 = vsel %vm297, %v1260, %v169
  %v1294 = vsel %vm297, %v1261, %v172
  %v1295 = vsel %vm297, %v1262, %v177
  %v1296 = vsel %vm297, %v1263, %v180
  %v1297 = vsel %vm297, %v1264, %v185
  %v1298 = vsel %vm297, %v1265, %v188
  %v1299 = vsel %vm297, %v1266, %v193
  %v1300 = vsel %vm297, %v1267, %v196
  %v1301 = vsel %vm297, %v1268, %v201
  %v1302 = vsel %vm297, %v1269, %v204
  %v1303 = vsel %vm297, %v1270, %v209
  %v1304 = vsel %vm297, %v1271, %v212
  %v1305 = vsel %vm297, %v1272, %v217
  %v1306 = vsel %vm297, %v1273, %v220
  %v1307 = vsel %vm297, %v1274, %v225
  %v1308 = vsel %vm297, %v1275, %v228
  %v1309 = vsel %vm297, %v1276, %v233
  %v1310 = vsel %vm297, %v1277, %v236
  %v1311 = vsel %vm297, %v1278, %v241
  %v1312 = vsel %vm297, %v1279, %v244
  %v1313 = vsel %vm297, %v1280, %v249
  %v1314 = vsel %vm297, %v1281, %v252
  %v1315 = vsel %vm297, %v1282, %v257
  %v1316 = vsel %vm297, %v1283, %v260
  %v1317 = vsel %vm297, %v1284, %v265
  %v1318 = vsel %vm297, %v1285, %v268
  %v1319 = vsel %vm297, %v1286, %v273
  %v1320 = vsel %vm297, %v1287, %v276
  %v1321 = vsel %vm297, %v1288, %v281
  %v1322 = vsel %vm297, %v1289, %v284
  %v1323 = vsel %vm297, %v1290, %v289
  %v1324 = vsel %vm297, %v1291, %v292
  %v1325 = vsel %vm1292, %v1030, %v1293
  %v1326 = vsel %vm1292, %v1033, %v1294
  %v1327 = vsel %vm1292, %v1038, %v1295
  %v1328 = vsel %vm1292, %v1041, %v1296
  %v1329 = vsel %vm1292, %v1046, %v1297
  %v1330 = vsel %vm1292, %v1049, %v1298
  %v1331 = vsel %vm1292, %v1054, %v1299
  %v1332 = vsel %vm1292, %v1057, %v1300
  %v1333 = vsel %vm1292, %v1062, %v1301
  %v1334 = vsel %vm1292, %v1065, %v1302
  %v1335 = vsel %vm1292, %v1070, %v1303
  %v1336 = vsel %vm1292, %v1073, %v1304
  %v1337 = vsel %vm1292, %v1078, %v1305
  %v1338 = vsel %vm1292, %v1081, %v1306
  %v1339 = vsel %vm1292, %v1086, %v1307
  %v1340 = vsel %vm1292, %v1089, %v1308
  %v1341 = vsel %vm1292, %v1094, %v1309
  %v1342 = vsel %vm1292, %v1097, %v1310
  %v1343 = vsel %vm1292, %v1102, %v1311
  %v1344 = vsel %vm1292, %v1105, %v1312
  %v1345 = vsel %vm1292, %v1110, %v1313
  %v1346 = vsel %vm1292, %v1113, %v1314
  %v1347 = vsel %vm1292, %v1118, %v1315
  %v1348 = vsel %vm1292, %v1121, %v1316
  %v1349 = vsel %vm1292, %v1126, %v1317
  %v1350 = vsel %vm1292, %v1129, %v1318
  %v1351 = vsel %vm1292, %v1134, %v1319
  %v1352 = vsel %vm1292, %v1137, %v1320
  %v1353 = vsel %vm1292, %v1142, %v1321
  %v1354 = vsel %vm1292, %v1145, %v1322
  %v1355 = vsel %vm1292, %v1150, %v1323
  %v1356 = vsel %vm1292, %v1153, %v1324
  %v1357 = vadd.f32 %v1325, %v21
  %v1358 = vadd.f32 %v1326, %v22
  %v1359 = vadd.f32 %v1327, %v23
  %v1360 = vadd.f32 %v1328, %v24
  %v1361 = vadd.f32 %v1329, %v25
  %v1362 = vadd.f32 %v1330, %v26
  %v1363 = vadd.f32 %v1331, %v27
  %v1364 = vadd.f32 %v1332, %v28
  %v1365 = vadd.f32 %v1333, %v29
  %v1366 = vadd.f32 %v1334, %v30
  %v1367 = vadd.f32 %v1335, %v31
  %v1368 = vadd.f32 %v1336, %v32
  %v1369 = vadd.f32 %v1337, %v33
  %v1370 = vadd.f32 %v1338, %v34
  %v1371 = vadd.f32 %v1339, %v35
  %v1372 = vadd.f32 %v1340, %v36
  %v1373 = vadd.f32 %v1341, %v37
  %v1374 = vadd.f32 %v1342, %v38
  %v1375 = vadd.f32 %v1343, %v39
  %v1376 = vadd.f32 %v1344, %v40
  %v1377 = vadd.f32 %v1345, %v41
  %v1378 = vadd.f32 %v1346, %v42
  %v1379 = vadd.f32 %v1347, %v43
  %v1380 = vadd.f32 %v1348, %v44
  %v1381 = vadd.f32 %v1349, %v45
  %v1382 = vadd.f32 %v1350, %v46
  %v1383 = vadd.f32 %v1351, %v47
  %v1384 = vadd.f32 %v1352, %v48
  %v1385 = vadd.f32 %v1353, %v49
  %v1386 = vadd.f32 %v1354, %v50
  %v1387 = vadd.f32 %v1355, %v51
  %v1388 = vadd.f32 %v1356, %v52
  %v1389 = vld [vmem:[%s1] sm:$0xff]
  %v1390 = vld [vmem:[%s1 + $0x8] sm:$0xff]
  %v1391 = vld [vmem:[%s1 + $0x10] sm:$0xff]
  %v1392 = vld [vmem:[%s1 + $0x18] sm:$0xff]
  %v1393 = vld [vmem:[%s1 + $0x20] sm:$0xff]
  %v1394 = vld [vmem:[%s1 + $0x28] sm:$0xff]
  %v1395 = vld [vmem:[%s1 + $0x30] sm:$0xff]
  %v1396 = vld [vmem:[%s1 + $0x38] sm:$0xff]
  %v1397 = vld [vmem:[%s1 + $0x40] sm:$0xff]
  %v1398 = vld [vmem:[%s1 + $0x48] sm:$0xff]
  %v1399 = vld [vmem:[%s1 + $0x50] sm:$0xff]
  %v1400 = vld [vmem:[%s1 + $0x58] sm:$0xff]
  %v1401 = vld [vmem:[%s1 + $0x60] sm:$0xff]
  %v1402 = vld [vmem:[%s1 + $0x68] sm:$0xff]
  %v1403 = vld [vmem:[%s1 + $0x70] sm:$0xff]
  %v1404 = vld [vmem:[%s1 + $0x78] sm:$0xff]
  %v1405 = vld [vmem:[%s1 + $0x80] sm:$0xff]
  %v1406 = vld [vmem:[%s1 + $0x88] sm:$0xff]
  %v1407 = vld [vmem:[%s1 + $0x90] sm:$0xff]
  %v1408 = vld [vmem:[%s1 + $0x98] sm:$0xff]
  %v1409 = vld [vmem:[%s1 + $0xa0] sm:$0xff]
  %v1410 = vld [vmem:[%s1 + $0xa8] sm:$0xff]
  %v1411 = vld [vmem:[%s1 + $0xb0] sm:$0xff]
  %v1412 = vld [vmem:[%s1 + $0xb8] sm:$0xff]
  %v1413 = vld [vmem:[%s1 + $0xc0] sm:$0xff]
  %v1414 = vld [vmem:[%s1 + $0xc8] sm:$0xff]
  %v1415 = vld [vmem:[%s1 + $0xd0] sm:$0xff]
  %v1416 = vld [vmem:[%s1 + $0xd8] sm:$0xff]
  %v1417 = vld [vmem:[%s1 + $0xe0] sm:$0xff]
  %v1418 = vld [vmem:[%s1 + $0xe8] sm:$0xff]
  %v1419 = vld [vmem:[%s1 + $0xf0] sm:$0xff]
  %v1420 = vld [vmem:[%s1 + $0xf8] sm:$0xff]
  %v1421 = vadd.f32 %v1357, %v1389
  %v1422 = vadd.f32 %v1358, %v1390
  %v1423 = vadd.f32 %v1359, %v1391
  %v1424 = vadd.f32 %v1360, %v1392
  %v1425 = vadd.f32 %v1361, %v1393
  %v1426 = vadd.f32 %v1362, %v1394
  %v1427 = vadd.f32 %v1363, %v1395
  %v1428 = vadd.f32 %v1364, %v1396
  %v1429 = vadd.f32 %v1365, %v1397
  %v1430 = vadd.f32 %v1366, %v1398
  %v1431 = vadd.f32 %v1367, %v1399
  %v1432 = vadd.f32 %v1368, %v1400
  %v1433 = vadd.f32 %v1369, %v1401
  %v1434 = vadd.f32 %v1370, %v1402
  %v1435 = vadd.f32 %v1371, %v1403
  %v1436 = vadd.f32 %v1372, %v1404
  %v1437 = vadd.f32 %v1373, %v1405
  %v1438 = vadd.f32 %v1374, %v1406
  %v1439 = vadd.f32 %v1375, %v1407
  %v1440 = vadd.f32 %v1376, %v1408
  %v1441 = vadd.f32 %v1377, %v1409
  %v1442 = vadd.f32 %v1378, %v1410
  %v1443 = vadd.f32 %v1379, %v1411
  %v1444 = vadd.f32 %v1380, %v1412
  %v1445 = vadd.f32 %v1381, %v1413
  %v1446 = vadd.f32 %v1382, %v1414
  %v1447 = vadd.f32 %v1383, %v1415
  %v1448 = vadd.f32 %v1384, %v1416
  %v1449 = vadd.f32 %v1385, %v1417
  %v1450 = vadd.f32 %v1386, %v1418
  %v1451 = vadd.f32 %v1387, %v1419
  %v1452 = vadd.f32 %v1388, %v1420
  %1453 = vst.msk [vmem:[%s5] sm:$0xff] %vm85, %v1421
  %1454 = vst.msk [vmem:[%s5 + $0x8] sm:$0xff] %vm85, %v1422
  %1455 = vst.msk [vmem:[%s5 + $0x10] sm:$0xff] %vm85, %v1423
  %1456 = vst.msk [vmem:[%s5 + $0x18] sm:$0xff] %vm85, %v1424
  %1457 = vst.msk [vmem:[%s5 + $0x20] sm:$0xff] %vm85, %v1425
  %1458 = vst.msk [vmem:[%s5 + $0x28] sm:$0xff] %vm85, %v1426
  %1459 = vst.msk [vmem:[%s5 + $0x30] sm:$0xff] %vm85, %v1427
  %1460 = vst.msk [vmem:[%s5 + $0x38] sm:$0xff] %vm85, %v1428
  %1461 = vst.msk [vmem:[%s5 + $0x40] sm:$0xff] %vm85, %v1429
  %1462 = vst.msk [vmem:[%s5 + $0x48] sm:$0xff] %vm85, %v1430
  %1463 = vst.msk [vmem:[%s5 + $0x50] sm:$0xff] %vm85, %v1431
  %1464 = vst.msk [vmem:[%s5 + $0x58] sm:$0xff] %vm85, %v1432
  %1465 = vst.msk [vmem:[%s5 + $0x60] sm:$0xff] %vm85, %v1433
  %1466 = vst.msk [vmem:[%s5 + $0x68] sm:$0xff] %vm85, %v1434
  %1467 = vst.msk [vmem:[%s5 + $0x70] sm:$0xff] %vm85, %v1435
  %1468 = vst.msk [vmem:[%s5 + $0x78] sm:$0xff] %vm85, %v1436
  %1469 = vst.msk [vmem:[%s5 + $0x80] sm:$0xff] %vm85, %v1437
  %1470 = vst.msk [vmem:[%s5 + $0x88] sm:$0xff] %vm85, %v1438
  %1471 = vst.msk [vmem:[%s5 + $0x90] sm:$0xff] %vm85, %v1439
  %1472 = vst.msk [vmem:[%s5 + $0x98] sm:$0xff] %vm85, %v1440
  %1473 = vst.msk [vmem:[%s5 + $0xa0] sm:$0xff] %vm85, %v1441
  %1474 = vst.msk [vmem:[%s5 + $0xa8] sm:$0xff] %vm85, %v1442
  %1475 = vst.msk [vmem:[%s5 + $0xb0] sm:$0xff] %vm85, %v1443
  %1476 = vst.msk [vmem:[%s5 + $0xb8] sm:$0xff] %vm85, %v1444
  %1477 = vst.msk [vmem:[%s5 + $0xc0] sm:$0xff] %vm85, %v1445
  %1478 = vst.msk [vmem:[%s5 + $0xc8] sm:$0xff] %vm85, %v1446
  %1479 = vst.msk [vmem:[%s5 + $0xd0] sm:$0xff] %vm85, %v1447
  %1480 = vst.msk [vmem:[%s5 + $0xd8] sm:$0xff] %vm85, %v1448
  %1481 = vst.msk [vmem:[%s5 + $0xe0] sm:$0xff] %vm85, %v1449
  %1482 = vst.msk [vmem:[%s5 + $0xe8] sm:$0xff] %vm85, %v1450
  %1483 = vst.msk [vmem:[%s5 + $0xf0] sm:$0xff] %vm85, %v1451
  %1484 = vst.msk [vmem:[%s5 + $0xf8] sm:$0xff] %vm85, %v1452
  // Predicated region
  $region22: #{tpu_custom_call.1} parent=0 // pred_check
    _
  $region23: #{tpu_custom_call.1} parent=0 // pred_check_branch
    %1486 = sbr.rel (0) target = $region25
  $region24: #{tpu_custom_call.1} parent=0 // pred_region
    _
  $region25: #{tpu_custom_call.1} parent=0 // pred_fallthru
    _
  // Predicated region
  $region26: #{tpu_custom_call.1} parent=0 // pred_check
    _
  $region27: #{tpu_custom_call.1} parent=0 // pred_check_branch
    %1488 = sbr.rel (0) target = $region29
  $region28: #{tpu_custom_call.1} parent=0 // pred_region
    _
  $region29: #{tpu_custom_call.1} parent=0 // pred_fallthru
    _

</llo_original>
